<compile_context>
chip_gen: v7x
topology: tpu7x:2x2x1
jax: 0.10.0
libtpu: 0.0.40
codegen_flags: <defaults>
</compile_context>

<pallas_src>
import functools

import jax
import jax.numpy as jnp
from jax.experimental import pallas as pl
from jax.experimental.pallas import tpu as pltpu


_BIG_OFFSET = 1e30                     # padded codes can never win the argmin
_LANE = 128                            # TPU vreg lane width
_VMEM_SOFT_CAP = 60 * 1024 * 1024      # stay under v7x's 64 MiB physical VMEM


def _round_up(x, m):
    return ((x + m - 1) // m) * m


def _dkvb_kernel(x_ref, mt_ref, vcol_ref, out_ref, *, num_codebooks, padded_keys):
    """One batch tile of the fused bottleneck.

    x_ref    : (TB, E+1)    streamed input tile (last column is ones)
    mt_ref   : (C*Kp, E+1)  fused score matrix, offsets folded into column E (resident)
    vcol_ref : (C*Kp, 1)    values pre-averaged over value_dim, f32 (resident)
    out_ref  : (C, TB)      lane-dense output tile (transposed back in wrapper)
    """
    x = x_ref[...]                                            # (TB, E+1)

    # One MXU contraction covers random projection, project_in, codebook dot
    # AND the per-code offsets (ones column x offset row).  NT dimension
    # numbers (same pattern as q @ k^T) so scores land batch-on-lanes.
    scores = jax.lax.dot_general(
        mt_ref[...], x,
        dimension_numbers=(((1,), (1,)), ((), ())),
        preferred_element_type=jnp.float32)                   # (C*Kp, TB)

    kp = padded_keys
    tb = x.shape[0]
    sub_iota = jax.lax.broadcasted_iota(jnp.int32, (kp, tb), 0)   # hoisted

    # num_codebooks is small & static -> unrolled python loop.  Per head:
    # sublane min + masked-iota first-argmin (torch tie semantics) + exact f32
    # value select.  Slices are 128-aligned on the sublane axis (zero-cost).
    for c in range(num_codebooks):
        s = scores[c * kp:(c + 1) * kp, :]                    # (Kp, TB) aligned view
        min_s = jnp.min(s, axis=0, keepdims=True)             # (1, TB)
        idx = jnp.min(jnp.where(s == min_s, sub_iota, kp),
                      axis=0, keepdims=True)                  # (1, TB) first-argmin
        onehot = (sub_iota == idx).astype(jnp.float32)        # (Kp, TB)
        vcol = vcol_ref[c * kp:(c + 1) * kp, :]               # (Kp, 1)
        row = jnp.sum(onehot * vcol, axis=0)                  # (TB,) lane-oriented
        out_ref[c, :] = row.astype(out_ref.dtype)


def discrete_kv_bottleneck(batch, rand_proj, w_in, b_in, codebook, values, *,
                           block_b=512, score_dtype=jnp.float32,
                           single_buffer_residents=False):
    """Forward pass of DiscreteKeyValueBottleneck (encoder=None).

    batch     : (B, E)
    rand_proj : (C, E, D)
    w_in      : (C, D, D)   quantizer.project_in weight per head (out_feat, in_feat)
    b_in      : (C, 1, D)   quantizer.project_in bias per head
    codebook  : (C, K, D)   per-head euclidean codebook
    values    : (C, K, V)   learned value table
    returns   : (B, C)
    """
    f32 = jnp.float32
    batch = batch.astype(f32)
    rand_proj = rand_proj.astype(f32)
    w_in = w_in.astype(f32)
    b_in = b_in.astype(f32)
    codebook = codebook.astype(f32)
    values = values.astype(f32)

    B, E = batch.shape
    C = rand_proj.shape[0]
    K = codebook.shape[1]
    Kp = _round_up(K, _LANE)            # 128-aligned per-head key blocks
    Ep1 = E + 1                         # +1 contraction row carries the offsets
    CKp = C * Kp

    # ---- algebraic pre-fusion (outside the kernel, amortized over B) --------
    # q_c(x) = x @ A_c + b_c,   A_c = rand_proj[c] @ w_in[c]^T
    # argmin_k ||q - cb_k||^2 == argmin_k ( -2 q.cb_k + ||cb_k||^2 )
    #                         == argmin_k ( [x,1] @ MT[c*Kp+k, :] )
    A = jnp.einsum("ced,cfd->cef", rand_proj, w_in)               # (C, E, D)
    Mh = -2.0 * jnp.einsum("cef,ckf->cke", A, codebook)           # (C, K, E)
    cb_sq = jnp.sum(codebook * codebook, axis=-1)                 # (C, K)
    b_dot = jnp.einsum("cd,ckd->ck", b_in[:, 0, :], codebook)     # (C, K)
    offsets = cb_sq - 2.0 * b_dot                                 # (C, K)

    MT = jnp.zeros((C, Kp, Ep1), f32)
    MT = MT.at[:, :K, :E].set(Mh)
    MT = MT.at[:, :K, E].set(offsets)
    MT = MT.at[:, K:, E].set(_BIG_OFFSET)                         # pad codes lose
    MT = MT.reshape(CKp, Ep1).astype(score_dtype)

    vmean = jnp.mean(values, axis=-1)                             # (C, K): V removed
    vcol = jnp.zeros((C, Kp), f32).at[:, :K].set(vmean).reshape(CKp, 1)

    x_aug = jnp.concatenate([batch, jnp.ones((B, 1), f32)],
                            axis=1).astype(score_dtype)           # (B, E+1)

    # ---- tile selection & VMEM budgeting ------------------------------------
    sbytes = jnp.dtype(score_dtype).itemsize

    def vmem_bytes(tb):
        res_mult = 1 if single_buffer_residents else 2
        return int(1.5 * (
            2 * tb * Ep1 * sbytes                 # streamed x (double-buffered)
            + res_mult * CKp * Ep1 * sbytes       # resident fused score matrix
            + res_mult * CKp * 4                  # resident value column
            + 2 * C * tb * 4                      # output (double-buffered)
            + CKp * tb * 4                        # scores + per-head temps
        ))

    if B <= 256:
        tb = B                    # single tile, block dims == full array dims
    else:
        # >=2 grid steps so v7x's second TensorCore gets work; tile rows are a
        # multiple of 128 so the lane-dense (C, tb) output block stays aligned.
        tb = max(_LANE, min(block_b, _round_up(pl.cdiv(B, 2), _LANE)))
        while vmem_bytes(tb) > _VMEM_SOFT_CAP and tb > _LANE:
            tb = max(_LANE, tb // 2)

    grid = (pl.cdiv(B, tb),)
    vmem_limit = None if vmem_bytes(tb) < 16 * 1024 * 1024 else _VMEM_SOFT_CAP

    def resident_spec(shape):
        # Constant index_map: these stay in VMEM across the whole grid.  With
        # single_buffer_residents=True the default double buffer is dropped
        # (halves the resident footprint, useful on v7x's 64 MiB VMEM).
        if single_buffer_residents:
            return pl.BlockSpec(shape, lambda i: (0, 0),
                                pipeline_mode=pl.Buffered(1))
        return pl.BlockSpec(shape, lambda i: (0, 0))

    kernel = functools.partial(_dkvb_kernel, num_codebooks=C, padded_keys=Kp)

    # TODO(synk): if C*Kp grows large, add a second ("parallel") grid axis over
    # heads so MT / scores stream instead of staying fully resident.
    out_ct = pl.pallas_call(
        kernel,
        out_shape=jax.ShapeDtypeStruct((C, B), f32),
        grid_spec=pltpu.PrefetchScalarGridSpec(
            num_scalar_prefetch=0,
            grid=grid,
            in_specs=[
                pl.BlockSpec((tb, Ep1), lambda i: (i, 0)),   # streamed x tiles
                resident_spec((CKp, Ep1)),                   # fused score matrix
                resident_spec((CKp, 1)),                     # value means (f32)
            ],
            out_specs=pl.BlockSpec((C, tb), lambda i: (0, i)),  # lane-dense out
        ),
        compiler_params=pltpu.CompilerParams(
            dimension_semantics=("parallel",),   # B tiles shard across TCs on v7x
            vmem_limit_bytes=vmem_limit,
        ),
    )(x_aug, MT, vcol)

    return out_ct.T                                              # (B, C)


def _reference(batch, rand_proj, w_in, b_in, codebook, values):
    """Pure-JAX replica of the PyTorch forward (encoder=None), unfused."""
    outs = []
    C = rand_proj.shape[0]
    for x in batch:
        t = jnp.einsum("e,ced->cd", x, rand_proj)                 # (C, D)
        q = jnp.einsum("cd,cfd->cf", t, w_in) + b_in[:, 0, :]     # (C, D)
        d = jnp.sum((q[:, None, :] - codebook) ** 2, axis=-1)     # (C, K)
        idx = jnp.argmin(d, axis=-1)                              # diagonal indices
        mapped = values[jnp.arange(C), idx]                       # (C, V)
        outs.append(jnp.mean(mapped, axis=-1))                    # (C,)
    return jnp.stack(outs)


if __name__ == "__main__":
    # small shapes consistent with the module's __init__/forward
    B, E, D, C, K, V = 2, 32, 16, 2, 64, 8   # batch, enc_out_dim, embed_dim,
                                             # num_codebooks, keys_per_codebook, value_dim

    key = jax.random.PRNGKey(0)
    k0, k1, k2, k3, k4, k5 = jax.random.split(key, 6)

    batch = jax.random.normal(k0, (B, E), jnp.float32)

    # self.rand_proj = torch.randn((C, enc_out_dim, embed_dim))
    rand_proj = jax.random.normal(k1, (C, E, D), jnp.float32)

    # quantizer.project_in per-head weight (out_feat, in_feat) and bias
    w_in = jax.random.normal(k2, (C, D, D), jnp.float32) * (1.0 / jnp.sqrt(D))
    b_in = jax.random.normal(k3, (C, 1, D), jnp.float32) * 0.01

    # per-head euclidean codebook, shape (heads, codebook_size, dim)
    codebook = jax.random.normal(k4, (C, K, D), jnp.float32)

    # self.values: (C, K, V) with xavier_normal_
    xavier_std = (2.0 / (K * V + C * V)) ** 0.5
    values = jax.random.normal(k5, (C, K, V), jnp.float32) * xavier_std

    out = discrete_kv_bottleneck(batch, rand_proj, w_in, b_in, codebook, values)
    out = jax.block_until_ready(out)

    ref = _reference(batch, rand_proj, w_in, b_in, codebook, values)
    assert out.shape == (B, C), (out.shape, (B, C))
    # Distances are computed via the expanded -2*q.cb + ||cb||^2 form (offsets
    # folded into the matmul); for non-degenerate random data the argmin
    # matches the direct form, and the selected value means are bit-exact f32.
    assert jnp.allclose(out, ref, atol=1e-5, rtol=1e-5), (out, ref)

    print("KERNEL_OK")
</pallas_src>

<mosaic_0001>
module attributes {stable_mosaic.version = 11 : i64} {
  func.func @_dkvb_kernel(%arg0: i32, %arg1: memref<2x33xf32, #tpu.memory_space<vmem>>, %arg2: memref<256x33xf32, #tpu.memory_space<vmem>>, %arg3: memref<256x1xf32, #tpu.memory_space<vmem>>, %arg4: memref<2x2xf32, #tpu.memory_space<vmem>>) attributes {dimension_semantics = [#tpu.dimension_semantics<parallel>], iteration_bounds = array<i64: 1>, scalar_prefetch = 0 : i64, scratch_operands = 0 : i64, tpu.core_type = #tpu.core_type<tc>, window_params = [{transform_indices = @transform_0, window_bounds = array<i64: 2, 33>}, {pipeline_mode = #tpu.pipeline_mode<synchronous>, transform_indices = @transform_1, window_bounds = array<i64: 256, 33>}, {pipeline_mode = #tpu.pipeline_mode<synchronous>, transform_indices = @transform_2, window_bounds = array<i64: 256, 1>}, {transform_indices = @transform_3, window_bounds = array<i64: 2, 2>}]} {
    %c0 = arith.constant 0 : index
    %c0_0 = arith.constant 0 : index
    %0 = vector.load %arg1[%c0, %c0_0] : memref<2x33xf32, #tpu.memory_space<vmem>>, vector<2x33xf32>
    %c0_1 = arith.constant 0 : index
    %c0_2 = arith.constant 0 : index
    %1 = vector.load %arg2[%c0_1, %c0_2] : memref<256x33xf32, #tpu.memory_space<vmem>>, vector<256x33xf32>
    %cst = arith.constant dense<0.000000e+00> : vector<256x2xf32>
    %2 = tpu.matmul %1, %0, %cst {dimension_numbers = #tpu.dot_dimension_numbers<[1], [1], [0], [0], [0, 0, 1, 0], [], []>} : vector<256x33xf32>, vector<2x33xf32>, vector<256x2xf32> -> vector<256x2xf32>
    %3 = tpu.iota {dimensions = array<i32: 0>} : vector<128x2xi32>
    %4 = vector.extract_strided_slice %2 {offsets = [0, 0], sizes = [128, 2], strides = [1, 1]} : vector<256x2xf32> to vector<128x2xf32>
    %cst_3 = arith.constant dense<0x7F800000> : vector<2xf32>
    %5 = vector.multi_reduction <minimumf>, %4, %cst_3 [0] : vector<128x2xf32> to vector<2xf32>
    %6 = vector.shape_cast %5 : vector<2xf32> to vector<1x2xf32>
    %7 = vector.broadcast %6 : vector<1x2xf32> to vector<128x2xf32>
    %8 = arith.cmpf oeq, %4, %7 : vector<128x2xf32>
    %c128_i32 = arith.constant 128 : i32
    %9 = vector.broadcast %c128_i32 : i32 to vector<128x2xi32>
    %10 = arith.select %8, %3, %9 : vector<128x2xi1>, vector<128x2xi32>
    %cst_4 = arith.constant dense<2147483647> : vector<2xi32>
    %11 = vector.multi_reduction <minsi>, %10, %cst_4 [0] : vector<128x2xi32> to vector<2xi32>
    %12 = vector.shape_cast %11 : vector<2xi32> to vector<1x2xi32>
    %13 = vector.broadcast %12 : vector<1x2xi32> to vector<128x2xi32>
    %14 = arith.cmpi eq, %3, %13 : vector<128x2xi32>
    %15 = arith.extui %14 : vector<128x2xi1> to vector<128x2xi32>
    %16 = arith.sitofp %15 : vector<128x2xi32> to vector<128x2xf32>
    %c0_5 = arith.constant 0 : index
    %c0_6 = arith.constant 0 : index
    %17 = vector.load %arg3[%c0_5, %c0_6] : memref<256x1xf32, #tpu.memory_space<vmem>>, vector<128x1xf32>
    %18 = vector.broadcast %17 : vector<128x1xf32> to vector<128x2xf32>
    %19 = arith.mulf %16, %18 : vector<128x2xf32>
    %cst_7 = arith.constant dense<0.000000e+00> : vector<2xf32>
    %20 = vector.multi_reduction <add>, %19, %cst_7 [0] : vector<128x2xf32> to vector<2xf32>
    %c0_8 = arith.constant 0 : index
    %c0_9 = arith.constant 0 : index
    %21 = vector.load %arg4[%c0_8, %c0_9] : memref<2x2xf32, #tpu.memory_space<vmem>>, vector<1x2xf32>
    %22 = vector.shape_cast %21 : vector<1x2xf32> to vector<2xf32>
    %23 = vector.shape_cast %20 : vector<2xf32> to vector<1x2xf32>
    tpu.vector_store %arg4[%c0_8, %c0_9], %23 {strides = array<i32>} : memref<2x2xf32, #tpu.memory_space<vmem>>, vector<1x2xf32>,
    %24 = vector.extract_strided_slice %2 {offsets = [128, 0], sizes = [128, 2], strides = [1, 1]} : vector<256x2xf32> to vector<128x2xf32>
    %cst_10 = arith.constant dense<0x7F800000> : vector<2xf32>
    %25 = vector.multi_reduction <minimumf>, %24, %cst_10 [0] : vector<128x2xf32> to vector<2xf32>
    %26 = vector.shape_cast %25 : vector<2xf32> to vector<1x2xf32>
    %27 = vector.broadcast %26 : vector<1x2xf32> to vector<128x2xf32>
    %28 = arith.cmpf oeq, %24, %27 : vector<128x2xf32>
    %c128_i32_11 = arith.constant 128 : i32
    %29 = vector.broadcast %c128_i32_11 : i32 to vector<128x2xi32>
    %30 = arith.select %28, %3, %29 : vector<128x2xi1>, vector<128x2xi32>
    %cst_12 = arith.constant dense<2147483647> : vector<2xi32>
    %31 = vector.multi_reduction <minsi>, %30, %cst_12 [0] : vector<128x2xi32> to vector<2xi32>
    %32 = vector.shape_cast %31 : vector<2xi32> to vector<1x2xi32>
    %33 = vector.broadcast %32 : vector<1x2xi32> to vector<128x2xi32>
    %34 = arith.cmpi eq, %3, %33 : vector<128x2xi32>
    %35 = arith.extui %34 : vector<128x2xi1> to vector<128x2xi32>
    %36 = arith.sitofp %35 : vector<128x2xi32> to vector<128x2xf32>
    %c128 = arith.constant 128 : index
    %c0_13 = arith.constant 0 : index
    %37 = vector.load %arg3[%c128, %c0_13] : memref<256x1xf32, #tpu.memory_space<vmem>>, vector<128x1xf32>
    %38 = vector.broadcast %37 : vector<128x1xf32> to vector<128x2xf32>
    %39 = arith.mulf %36, %38 : vector<128x2xf32>
    %cst_14 = arith.constant dense<0.000000e+00> : vector<2xf32>
    %40 = vector.multi_reduction <add>, %39, %cst_14 [0] : vector<128x2xf32> to vector<2xf32>
    %c1 = arith.constant 1 : index
    %c0_15 = arith.constant 0 : index
    %41 = vector.load %arg4[%c1, %c0_15] : memref<2x2xf32, #tpu.memory_space<vmem>>, vector<1x2xf32>
    %42 = vector.shape_cast %41 : vector<1x2xf32> to vector<2xf32>
    %43 = vector.shape_cast %40 : vector<2xf32> to vector<1x2xf32>
    tpu.vector_store %arg4[%c1, %c0_15], %43 {strides = array<i32>} : memref<2x2xf32, #tpu.memory_space<vmem>>, vector<1x2xf32>,
    return
  }
  func.func @transform_0(%arg0: i32) -> (i32, i32) {
    %c0_i32 = arith.constant 0 : i32
    %c0_i32_0 = arith.constant 0 : i32
    return %arg0, %c0_i32 : i32, i32
  }
  func.func @transform_1(%arg0: i32) -> (i32, i32) {
    %c0_i32 = arith.constant 0 : i32
    %c0_i32_0 = arith.constant 0 : i32
    %c0_i32_1 = arith.constant 0 : i32
    return %c0_i32, %c0_i32_0 : i32, i32
  }
  func.func @transform_2(%arg0: i32) -> (i32, i32) {
    %c0_i32 = arith.constant 0 : i32
    %c0_i32_0 = arith.constant 0 : i32
    %c0_i32_1 = arith.constant 0 : i32
    return %c0_i32, %c0_i32_0 : i32, i32
  }
  func.func @transform_3(%arg0: i32) -> (i32, i32) {
    %c0_i32 = arith.constant 0 : i32
    %c0_i32_0 = arith.constant 0 : i32
    return %c0_i32, %arg0 : i32, i32
  }
}

</mosaic_0001>

<llo_original>
// kernel: tpu_custom_call.1
$region0: #{tpu_custom_call.1}
  #allocation0 [shape = 'u32[]', space=smem, size = 0x4, offset = 0x4, fixed_abs, tag = 'smem constant byte address 0x4 - core index']
  #allocation1 [shape = 'u32[144,128]{1,0:T(1,128)}', space=vmem, size = 0x12000, scoped, tag = 'internal scratch']
  %s0 = inlined_call_operand.vmem [shape: f32[2,33], index: 0, kind: input, shape index: {}]
  %s1 = inlined_call_operand.vmem [shape: f32[256,33], index: 1, kind: input, shape index: {}]
  %s2 = inlined_call_operand.vmem [shape: f32[256,1], index: 2, kind: input, shape index: {}]
  %s3 = inlined_call_operand.hbm [shape: f32[2,2], index: 3, kind: output, shape index: {}]
  %s4 = sld [smem:[#allocation0]]
  $region22: #{tpu_custom_call.1} parent=0
    _
  %s6 = ssub.s32 1, %s4
  %s7 = scalar_select 0, %s6, %s4
  $region1: #{tpu_custom_call.1} parent=0
    #allocation2 [shape = 'u8[1024]{0}', space=vmem, size = 0x400, scoped, tag = 'output window, operand 0, single buffered']
    #allocation3 [shape = 's32[1]{0}', space=sflag, size = 0x4, scoped, tag = 'scoped memory for tpu_custom_call.1']
    %8 = vsyncpa [#allocation3], 0
    // Predicated region
    $region2: #{tpu_custom_call.1} parent=1 // pred_check
      _
    $region3: #{tpu_custom_call.1} parent=1 // pred_check_branch
      %10 = sbr.rel (0) target = $region5
    $region4: #{tpu_custom_call.1} parent=1 // pred_region
      _
    $region5: #{tpu_custom_call.1} parent=1 // pred_fallthru
      _
    // Predicated region
    $region6: #{tpu_custom_call.1} parent=1 // pred_check
      _
    $region7: #{tpu_custom_call.1} parent=1 // pred_check_branch
      %12 = sbr.rel (0) target = $region9
    $region8: #{tpu_custom_call.1} parent=1 // pred_region
      _
    $region9: #{tpu_custom_call.1} parent=1 // pred_fallthru
      _
    // Predicated region
    $region10: #{tpu_custom_call.1} parent=1 // pred_check
      _
    $region11: #{tpu_custom_call.1} parent=1 // pred_check_branch
      %14 = sbr.rel (0) target = $region13
    $region12: #{tpu_custom_call.1} parent=1 // pred_region
      _
    $region13: #{tpu_custom_call.1} parent=1 // pred_fallthru
      _
    %v15 = vld [vmem:[%s0] sm:$0x3]
    %v16 = vld [vmem:[%s1] sm:$0xff]
    %v17 = vld [vmem:[%s1 + $0x8] sm:$0xff]
    %v18 = vld [vmem:[%s1 + $0x10] sm:$0xff]
    %v19 = vld [vmem:[%s1 + $0x18] sm:$0xff]
    %v20 = vld [vmem:[%s1 + $0x20] sm:$0xff]
    %v21 = vld [vmem:[%s1 + $0x28] sm:$0xff]
    %v22 = vld [vmem:[%s1 + $0x30] sm:$0xff]
    %v23 = vld [vmem:[%s1 + $0x38] sm:$0xff]
    %v24 = vld [vmem:[%s1 + $0x40] sm:$0xff]
    %v25 = vld [vmem:[%s1 + $0x48] sm:$0xff]
    %v26 = vld [vmem:[%s1 + $0x50] sm:$0xff]
    %v27 = vld [vmem:[%s1 + $0x58] sm:$0xff]
    %v28 = vld [vmem:[%s1 + $0x60] sm:$0xff]
    %v29 = vld [vmem:[%s1 + $0x68] sm:$0xff]
    %v30 = vld [vmem:[%s1 + $0x70] sm:$0xff]
    %v31 = vld [vmem:[%s1 + $0x78] sm:$0xff]
    %v32 = vld [vmem:[%s1 + $0x80] sm:$0xff]
    %v33 = vld [vmem:[%s1 + $0x88] sm:$0xff]
    %v34 = vld [vmem:[%s1 + $0x90] sm:$0xff]
    %v35 = vld [vmem:[%s1 + $0x98] sm:$0xff]
    %v36 = vld [vmem:[%s1 + $0xa0] sm:$0xff]
    %v37 = vld [vmem:[%s1 + $0xa8] sm:$0xff]
    %v38 = vld [vmem:[%s1 + $0xb0] sm:$0xff]
    %v39 = vld [vmem:[%s1 + $0xb8] sm:$0xff]
    %v40 = vld [vmem:[%s1 + $0xc0] sm:$0xff]
    %v41 = vld [vmem:[%s1 + $0xc8] sm:$0xff]
    %v42 = vld [vmem:[%s1 + $0xd0] sm:$0xff]
    %v43 = vld [vmem:[%s1 + $0xd8] sm:$0xff]
    %v44 = vld [vmem:[%s1 + $0xe0] sm:$0xff]
    %v45 = vld [vmem:[%s1 + $0xe8] sm:$0xff]
    %v46 = vld [vmem:[%s1 + $0xf0] sm:$0xff]
    %v47 = vld [vmem:[%s1 + $0xf8] sm:$0xff]
    %vm48 = vcmask 269312
    %v50 = vsel %vm48, %v16, 0
    %v53 = vsel %vm48, %v17, 0
    %v56 = vsel %vm48, %v18, 0
    %v59 = vsel %vm48, %v19, 0
    %v62 = vsel %vm48, %v20, 0
    %v65 = vsel %vm48, %v21, 0
    %v68 = vsel %vm48, %v22, 0
    %v71 = vsel %vm48, %v23, 0
    %v74 = vsel %vm48, %v24, 0
    %v77 = vsel %vm48, %v25, 0
    %v80 = vsel %vm48, %v26, 0
    %v83 = vsel %vm48, %v27, 0
    %v86 = vsel %vm48, %v28, 0
    %v89 = vsel %vm48, %v29, 0
    %v92 = vsel %vm48, %v30, 0
    %v95 = vsel %vm48, %v31, 0
    %v98 = vsel %vm48, %v32, 0
    %v101 = vsel %vm48, %v33, 0
    %v104 = vsel %vm48, %v34, 0
    %v107 = vsel %vm48, %v35, 0
    %v110 = vsel %vm48, %v36, 0
    %v113 = vsel %vm48, %v37, 0
    %v116 = vsel %vm48, %v38, 0
    %v119 = vsel %vm48, %v39, 0
    %v122 = vsel %vm48, %v40, 0
    %v125 = vsel %vm48, %v41, 0
    %v128 = vsel %vm48, %v42, 0
    %v131 = vsel %vm48, %v43, 0
    %v134 = vsel %vm48, %v44, 0
    %v137 = vsel %vm48, %v45, 0
    %v140 = vsel %vm48, %v46, 0
    %v143 = vsel %vm48, %v47, 0
    %v146 = vsel %vm48, %v15, 0
    %148 = vmatprep.subr.mxu0 0.0
    %149 = vmatpush1.xpose.msra.mxu0 %v146
    %150 = vmatprep.subr.mxu0 0.0
    %151 = vmatpush1.xpose.msra.mxu0 0.0
    %152 = vmatprep.subr.mxu0 0.0
    %153 = vmatpush1.xpose.msra.mxu0 0.0
    %154 = vmatprep.subr.mxu0 0.0
    %155 = vmatpush1.xpose.msra.mxu0 0.0
    %156 = vmatprep.subr.mxu0 0.0
    %157 = vmatpush1.xpose.msra.mxu0 0.0
    %158 = vmatprep.subr.mxu0 0.0
    %159 = vmatpush1.xpose.msra.mxu0 0.0
    %160 = vmatprep.subr.mxu0 0.0
    %161 = vmatpush1.xpose.msra.mxu0 0.0
    %162 = vmatprep.subr.mxu0 0.0
    %163 = vmatpush1.xpose.msra.mxu0 0.0
    %164 = vmatprep.subr.mxu0 0.0
    %165 = vmatpush1.xpose.msra.mxu0 0.0
    %166 = vmatprep.subr.mxu0 0.0
    %167 = vmatpush1.xpose.msra.mxu0 0.0
    %168 = vmatprep.subr.mxu0 0.0
    %169 = vmatpush1.xpose.msra.mxu0 0.0
    %170 = vmatprep.subr.mxu0 0.0
    %171 = vmatpush1.xpose.msra.mxu0 0.0
    %172 = vmatprep.subr.mxu0 0.0
    %173 = vmatpush1.xpose.msra.mxu0 0.0
    %174 = vmatprep.subr.mxu0 0.0
    %175 = vmatpush1.xpose.msra.mxu0 0.0
    %176 = vmatprep.subr.mxu0 0.0
    %177 = vmatpush1.xpose.msra.mxu0 0.0
    %178 = vmatprep.subr.mxu0 0.0
    %179 = vmatpush1.xpose.msra.mxu0 0.0
    %180 = vmatprep.subr.mxu0 0.0
    %181 = vmatpush1.xpose.msra.mxu0 0.0
    %182 = vmatprep.subr.mxu0 0.0
    %183 = vmatpush1.xpose.msra.mxu0 0.0
    %184 = vmatprep.subr.mxu0 0.0
    %185 = vmatpush1.xpose.msra.mxu0 0.0
    %186 = vmatprep.subr.mxu0 0.0
    %187 = vmatpush1.xpose.msra.mxu0 0.0
    %188 = vmatprep.subr.mxu0 0.0
    %189 = vmatpush1.xpose.msra.mxu0 0.0
    %190 = vmatprep.subr.mxu0 0.0
    %191 = vmatpush1.xpose.msra.mxu0 0.0
    %192 = vmatprep.subr.mxu0 0.0
    %193 = vmatpush1.xpose.msra.mxu0 0.0
    %194 = vmatprep.subr.mxu0 0.0
    %195 = vmatpush1.xpose.msra.mxu0 0.0
    %196 = vmatprep.subr.mxu0 0.0
    %197 = vmatpush1.xpose.msra.mxu0 0.0
    %198 = vmatprep.subr.mxu0 0.0
    %199 = vmatpush1.xpose.msra.mxu0 0.0
    %200 = vmatprep.subr.mxu0 0.0
    %201 = vmatpush1.xpose.msra.mxu0 0.0
    %202 = vmatprep.subr.mxu0 0.0
    %203 = vmatpush1.xpose.msra.mxu0 0.0
    %204 = vmatprep.subr.mxu0 0.0
    %205 = vmatpush1.xpose.msra.mxu0 0.0
    %206 = vmatprep.subr.mxu0 0.0
    %207 = vmatpush1.xpose.msra.mxu0 0.0
    %208 = vmatprep.subr.mxu0 0.0
    %209 = vmatpush1.xpose.msra.mxu0 0.0
    %210 = vmatprep.subr.mxu0 0.0
    %211 = vmatpush1.xpose.msra.mxu0 0.0
    %212 = vmatprep.mubr.f32.mxu0 0.0
    %213 = vmatmul.mubr.f32.gmra.mrb[0].mxu0 %v50
    %v214 = vpop.f32.mrb[0].mxu0
    %v215 = vadd.f32 0.0, %v214
    %v216 = vpop.f32.mrb[0].mxu0
    %217 = vmatprep.mubr.f32.mxu0 0.0
    %218 = vmatmul.mubr.f32.gmra.mrb[0].mxu0 %v53
    %v219 = vpop.f32.mrb[0].mxu0
    %v220 = vadd.f32 0.0, %v219
    %v221 = vpop.f32.mrb[0].mxu0
    %222 = vmatprep.mubr.f32.mxu0 0.0
    %223 = vmatmul.mubr.f32.gmra.mrb[0].mxu0 %v56
    %v224 = vpop.f32.mrb[0].mxu0
    %v225 = vadd.f32 0.0, %v224
    %v226 = vpop.f32.mrb[0].mxu0
    %227 = vmatprep.mubr.f32.mxu0 0.0
    %228 = vmatmul.mubr.f32.gmra.mrb[0].mxu0 %v59
    %v229 = vpop.f32.mrb[0].mxu0
    %v230 = vadd.f32 0.0, %v229
    %v231 = vpop.f32.mrb[0].mxu0
    %232 = vmatprep.mubr.f32.mxu0 0.0
    %233 = vmatmul.mubr.f32.gmra.mrb[0].mxu0 %v62
    %v234 = vpop.f32.mrb[0].mxu0
    %v235 = vadd.f32 0.0, %v234
    %v236 = vpop.f32.mrb[0].mxu0
    %237 = vmatprep.mubr.f32.mxu0 0.0
    %238 = vmatmul.mubr.f32.gmra.mrb[0].mxu0 %v65
    %v239 = vpop.f32.mrb[0].mxu0
    %v240 = vadd.f32 0.0, %v239
    %v241 = vpop.f32.mrb[0].mxu0
    %242 = vmatprep.mubr.f32.mxu0 0.0
    %243 = vmatmul.mubr.f32.gmra.mrb[0].mxu0 %v68
    %v244 = vpop.f32.mrb[0].mxu0
    %v245 = vadd.f32 0.0, %v244
    %v246 = vpop.f32.mrb[0].mxu0
    %247 = vmatprep.mubr.f32.mxu0 0.0
    %248 = vmatmul.mubr.f32.gmra.mrb[0].mxu0 %v71
    %v249 = vpop.f32.mrb[0].mxu0
    %v250 = vadd.f32 0.0, %v249
    %v251 = vpop.f32.mrb[0].mxu0
    %252 = vmatprep.mubr.f32.mxu0 0.0
    %253 = vmatmul.mubr.f32.gmra.mrb[0].mxu0 %v74
    %v254 = vpop.f32.mrb[0].mxu0
    %v255 = vadd.f32 0.0, %v254
    %v256 = vpop.f32.mrb[0].mxu0
    %257 = vmatprep.mubr.f32.mxu0 0.0
    %258 = vmatmul.mubr.f32.gmra.mrb[0].mxu0 %v77
    %v259 = vpop.f32.mrb[0].mxu0
    %v260 = vadd.f32 0.0, %v259
    %v261 = vpop.f32.mrb[0].mxu0
    %262 = vmatprep.mubr.f32.mxu0 0.0
    %263 = vmatmul.mubr.f32.gmra.mrb[0].mxu0 %v80
    %v264 = vpop.f32.mrb[0].mxu0
    %v265 = vadd.f32 0.0, %v264
    %v266 = vpop.f32.mrb[0].mxu0
    %267 = vmatprep.mubr.f32.mxu0 0.0
    %268 = vmatmul.mubr.f32.gmra.mrb[0].mxu0 %v83
    %v269 = vpop.f32.mrb[0].mxu0
    %v270 = vadd.f32 0.0, %v269
    %v271 = vpop.f32.mrb[0].mxu0
    %272 = vmatprep.mubr.f32.mxu0 0.0
    %273 = vmatmul.mubr.f32.gmra.mrb[0].mxu0 %v86
    %v274 = vpop.f32.mrb[0].mxu0
    %v275 = vadd.f32 0.0, %v274
    %v276 = vpop.f32.mrb[0].mxu0
    %277 = vmatprep.mubr.f32.mxu0 0.0
    %278 = vmatmul.mubr.f32.gmra.mrb[0].mxu0 %v89
    %v279 = vpop.f32.mrb[0].mxu0
    %v280 = vadd.f32 0.0, %v279
    %v281 = vpop.f32.mrb[0].mxu0
    %282 = vmatprep.mubr.f32.mxu0 0.0
    %283 = vmatmul.mubr.f32.gmra.mrb[0].mxu0 %v92
    %v284 = vpop.f32.mrb[0].mxu0
    %v285 = vadd.f32 0.0, %v284
    %v286 = vpop.f32.mrb[0].mxu0
    %287 = vmatprep.mubr.f32.mxu0 0.0
    %288 = vmatmul.mubr.f32.gmra.mrb[0].mxu0 %v95
    %v289 = vpop.f32.mrb[0].mxu0
    %v290 = vadd.f32 0.0, %v289
    %v291 = vpop.f32.mrb[0].mxu0
    %292 = vmatprep.mubr.f32.mxu0 0.0
    %293 = vmatmul.mubr.f32.gmra.mrb[0].mxu0 %v98
    %v294 = vpop.f32.mrb[0].mxu0
    %v295 = vadd.f32 0.0, %v294
    %v296 = vpop.f32.mrb[0].mxu0
    %297 = vmatprep.mubr.f32.mxu0 0.0
    %298 = vmatmul.mubr.f32.gmra.mrb[0].mxu0 %v101
    %v299 = vpop.f32.mrb[0].mxu0
    %v300 = vadd.f32 0.0, %v299
    %v301 = vpop.f32.mrb[0].mxu0
    %302 = vmatprep.mubr.f32.mxu0 0.0
    %303 = vmatmul.mubr.f32.gmra.mrb[0].mxu0 %v104
    %v304 = vpop.f32.mrb[0].mxu0
    %v305 = vadd.f32 0.0, %v304
    %v306 = vpop.f32.mrb[0].mxu0
    %307 = vmatprep.mubr.f32.mxu0 0.0
    %308 = vmatmul.mubr.f32.gmra.mrb[0].mxu0 %v107
    %v309 = vpop.f32.mrb[0].mxu0
    %v310 = vadd.f32 0.0, %v309
    %v311 = vpop.f32.mrb[0].mxu0
    %312 = vmatprep.mubr.f32.mxu0 0.0
    %313 = vmatmul.mubr.f32.gmra.mrb[0].mxu0 %v110
    %v314 = vpop.f32.mrb[0].mxu0
    %v315 = vadd.f32 0.0, %v314
    %v316 = vpop.f32.mrb[0].mxu0
    %317 = vmatprep.mubr.f32.mxu0 0.0
    %318 = vmatmul.mubr.f32.gmra.mrb[0].mxu0 %v113
    %v319 = vpop.f32.mrb[0].mxu0
    %v320 = vadd.f32 0.0, %v319
    %v321 = vpop.f32.mrb[0].mxu0
    %322 = vmatprep.mubr.f32.mxu0 0.0
    %323 = vmatmul.mubr.f32.gmra.mrb[0].mxu0 %v116
    %v324 = vpop.f32.mrb[0].mxu0
    %v325 = vadd.f32 0.0, %v324
    %v326 = vpop.f32.mrb[0].mxu0
    %327 = vmatprep.mubr.f32.mxu0 0.0
    %328 = vmatmul.mubr.f32.gmra.mrb[0].mxu0 %v119
    %v329 = vpop.f32.mrb[0].mxu0
    %v330 = vadd.f32 0.0, %v329
    %v331 = vpop.f32.mrb[0].mxu0
    %332 = vmatprep.mubr.f32.mxu0 0.0
    %333 = vmatmul.mubr.f32.gmra.mrb[0].mxu0 %v122
    %v334 = vpop.f32.mrb[0].mxu0
    %v335 = vadd.f32 0.0, %v334
    %v336 = vpop.f32.mrb[0].mxu0
    %337 = vmatprep.mubr.f32.mxu0 0.0
    %338 = vmatmul.mubr.f32.gmra.mrb[0].mxu0 %v125
    %v339 = vpop.f32.mrb[0].mxu0
    %v340 = vadd.f32 0.0, %v339
    %v341 = vpop.f32.mrb[0].mxu0
    %342 = vmatprep.mubr.f32.mxu0 0.0
    %343 = vmatmul.mubr.f32.gmra.mrb[0].mxu0 %v128
    %v344 = vpop.f32.mrb[0].mxu0
    %v345 = vadd.f32 0.0, %v344
    %v346 = vpop.f32.mrb[0].mxu0
    %347 = vmatprep.mubr.f32.mxu0 0.0
    %348 = vmatmul.mubr.f32.gmra.mrb[0].mxu0 %v131
    %v349 = vpop.f32.mrb[0].mxu0
    %v350 = vadd.f32 0.0, %v349
    %v351 = vpop.f32.mrb[0].mxu0
    %352 = vmatprep.mubr.f32.mxu0 0.0
    %353 = vmatmul.mubr.f32.gmra.mrb[0].mxu0 %v134
    %v354 = vpop.f32.mrb[0].mxu0
    %v355 = vadd.f32 0.0, %v354
    %v356 = vpop.f32.mrb[0].mxu0
    %357 = vmatprep.mubr.f32.mxu0 0.0
    %358 = vmatmul.mubr.f32.gmra.mrb[0].mxu0 %v137
    %v359 = vpop.f32.mrb[0].mxu0
    %v360 = vadd.f32 0.0, %v359
    %v361 = vpop.f32.mrb[0].mxu0
    %362 = vmatprep.mubr.f32.mxu0 0.0
    %363 = vmatmul.mubr.f32.gmra.mrb[0].mxu0 %v140
    %v364 = vpop.f32.mrb[0].mxu0
    %v365 = vadd.f32 0.0, %v364
    %v366 = vpop.f32.mrb[0].mxu0
    %367 = vmatprep.mubr.f32.mxu0 0.0
    %368 = vmatmul.mubr.f32.gmra.mrb[0].mxu0 %v143
    %v369 = vpop.f32.mrb[0].mxu0
    %v370 = vadd.f32 0.0, %v369
    %v371 = vpop.f32.mrb[0].mxu0
    %372 = vdwg.mxu0
    %v373 = vlaneseq
    %v374 = vshrl.u32 %v373, 7
    %v375 = vadd.s32 %v374, 8
    %v376 = vadd.s32 %v374, 16
    %v377 = vadd.s32 %v374, 24
    %v378 = vadd.s32 %v374, 32
    %v379 = vadd.s32 %v374, 40
    %v380 = vadd.s32 %v374, 48
    %v381 = vadd.s32 %v374, 56
    %v382 = vadd.s32 %v374, 64
    %v383 = vadd.s32 %v374, 72
    %v384 = vadd.s32 %v374, 80
    %v385 = vadd.s32 %v374, 88
    %v386 = vadd.s32 %v374, 96
    %v387 = vadd.s32 %v374, 104
    %v388 = vadd.s32 %v374, 112
    %v389 = vadd.s32 %v374, 120
    %vm390 = vcmask 15360
    %v391 = vsel %vm390, %v215, inf
    %v392 = vsel %vm390, %v220, inf
    %v393 = vsel %vm390, %v225, inf
    %v394 = vsel %vm390, %v230, inf
    %v395 = vsel %vm390, %v235, inf
    %v396 = vmin.f32 %v391, %v395
    %v397 = vsel %vm390, %v240, inf
    %v398 = vmin.f32 %v392, %v397
    %v399 = vsel %vm390, %v245, inf
    %v400 = vmin.f32 %v393, %v399
    %v401 = vsel %vm390, %v250, inf
    %v402 = vmin.f32 %v394, %v401
    %v403 = vsel %vm390, %v255, inf
    %v404 = vmin.f32 %v396, %v403
    %v405 = vsel %vm390, %v260, inf
    %v406 = vmin.f32 %v398, %v405
    %v407 = vsel %vm390, %v265, inf
    %v408 = vmin.f32 %v400, %v407
    %v409 = vsel %vm390, %v270, inf
    %v410 = vmin.f32 %v402, %v409
    %v411 = vsel %vm390, %v275, inf
    %v412 = vmin.f32 %v404, %v411
    %v413 = vsel %vm390, %v280, inf
    %v414 = vmin.f32 %v406, %v413
    %v415 = vsel %vm390, %v285, inf
    %v416 = vmin.f32 %v408, %v415
    %v417 = vsel %vm390, %v290, inf
    %v418 = vmin.f32 %v410, %v417
    %v419 = vmin.f32 %v412, %v414
    %v420 = vmin.f32 %v416, %v418
    %v421 = vmin.f32 %v419, %v420
    %v422 = vrot.slane %v421, 4
    %v423 = vmin.f32 %v421, %v422
    %v424 = vrot.slane %v423, 2
    %v425 = vmin.f32 %v423, %v424
    %v426 = vrot.slane %v425, 1
    %v427 = vmin.f32 %v425, %v426
    %vm428 = vcmp.eq.f32.partialorder %v215, %v427
    %vm429 = vcmp.eq.f32.partialorder %v220, %v427
    %vm430 = vcmp.eq.f32.partialorder %v225, %v427
    %vm431 = vcmp.eq.f32.partialorder %v230, %v427
    %vm432 = vcmp.eq.f32.partialorder %v235, %v427
    %vm433 = vcmp.eq.f32.partialorder %v240, %v427
    %vm434 = vcmp.eq.f32.partialorder %v245, %v427
    %vm435 = vcmp.eq.f32.partialorder %v250, %v427
    %vm436 = vcmp.eq.f32.partialorder %v255, %v427
    %vm437 = vcmp.eq.f32.partialorder %v260, %v427
    %vm438 = vcmp.eq.f32.partialorder %v265, %v427
    %vm439 = vcmp.eq.f32.partialorder %v270, %v427
    %vm440 = vcmp.eq.f32.partialorder %v275, %v427
    %vm441 = vcmp.eq.f32.partialorder %v280, %v427
    %vm442 = vcmp.eq.f32.partialorder %v285, %v427
    %vm443 = vcmp.eq.f32.partialorder %v290, %v427
    %v444 = vsel %vm428, %v374, 128
    %v445 = vsel %vm429, %v375, 128
    %v446 = vsel %vm430, %v376, 128
    %v447 = vsel %vm431, %v377, 128
    %v448 = vsel %vm432, %v378, 128
    %v449 = vsel %vm433, %v379, 128
    %v450 = vsel %vm434, %v380, 128
    %v451 = vsel %vm435, %v381, 128
    %v452 = vsel %vm436, %v382, 128
    %v453 = vsel %vm437, %v383, 128
    %v454 = vsel %vm438, %v384, 128
    %v455 = vsel %vm439, %v385, 128
    %v456 = vsel %vm440, %v386, 128
    %v457 = vsel %vm441, %v387, 128
    %v458 = vsel %vm442, %v388, 128
    %v459 = vsel %vm443, %v389, 128
    %v460 = vsel %vm390, %v444, 2147483647
    %v461 = vsel %vm390, %v445, 2147483647
    %v462 = vsel %vm390, %v446, 2147483647
    %v463 = vsel %vm390, %v447, 2147483647
    %v464 = vsel %vm390, %v448, 2147483647
    %vm465 = vcmp.lt.s32.totalorder %v460, %v464
    %v466 = vsel %vm465, %v460, %v464
    %v467 = vsel %vm390, %v449, 2147483647
    %vm468 = vcmp.lt.s32.totalorder %v461, %v467
    %v469 = vsel %vm468, %v461, %v467
    %v470 = vsel %vm390, %v450, 2147483647
    %vm471 = vcmp.lt.s32.totalorder %v462, %v470
    %v472 = vsel %vm471, %v462, %v470
    %v473 = vsel %vm390, %v451, 2147483647
    %vm474 = vcmp.lt.s32.totalorder %v463, %v473
    %v475 = vsel %vm474, %v463, %v473
    %v476 = vsel %vm390, %v452, 2147483647
    %vm477 = vcmp.lt.s32.totalorder %v466, %v476
    %v478 = vsel %vm477, %v466, %v476
    %v479 = vsel %vm390, %v453, 2147483647
    %vm480 = vcmp.lt.s32.totalorder %v469, %v479
    %v481 = vsel %vm480, %v469, %v479
    %v482 = vsel %vm390, %v454, 2147483647
    %vm483 = vcmp.lt.s32.totalorder %v472, %v482
    %v484 = vsel %vm483, %v472, %v482
    %v485 = vsel %vm390, %v455, 2147483647
    %vm486 = vcmp.lt.s32.totalorder %v475, %v485
    %v487 = vsel %vm486, %v475, %v485
    %v488 = vsel %vm390, %v456, 2147483647
    %vm489 = vcmp.lt.s32.totalorder %v478, %v488
    %v490 = vsel %vm489, %v478, %v488
    %v491 = vsel %vm390, %v457, 2147483647
    %vm492 = vcmp.lt.s32.totalorder %v481, %v491
    %v493 = vsel %vm492, %v481, %v491
    %v494 = vsel %vm390, %v458, 2147483647
    %vm495 = vcmp.lt.s32.totalorder %v484, %v494
    %v496 = vsel %vm495, %v484, %v494
    %v497 = vsel %vm390, %v459, 2147483647
    %vm498 = vcmp.lt.s32.totalorder %v487, %v497
    %v499 = vsel %vm498, %v487, %v497
    %vm500 = vcmp.lt.s32.totalorder %v490, %v493
    %v501 = vsel %vm500, %v490, %v493
    %vm502 = vcmp.lt.s32.totalorder %v496, %v499
    %v503 = vsel %vm502, %v496, %v499
    %vm504 = vcmp.lt.s32.totalorder %v501, %v503
    %v505 = vsel %vm504, %v501, %v503
    %v506 = vrot.slane %v505, 4
    %vm507 = vcmp.lt.s32.totalorder %v505, %v506
    %v508 = vsel %vm507, %v505, %v506
    %v509 = vrot.slane %v508, 2
    %vm510 = vcmp.lt.s32.totalorder %v508, %v509
    %v511 = vsel %vm510, %v508, %v509
    %v512 = vrot.slane %v511, 1
    %vm513 = vcmp.lt.s32.totalorder %v511, %v512
    %v514 = vsel %vm513, %v511, %v512
    %vm515 = vcmp.eq.s32.totalorder %v374, %v514
    %vm516 = vcmp.eq.s32.totalorder %v375, %v514
    %vm517 = vcmp.eq.s32.totalorder %v376, %v514
    %vm518 = vcmp.eq.s32.totalorder %v377, %v514
    %vm519 = vcmp.eq.s32.totalorder %v378, %v514
    %vm520 = vcmp.eq.s32.totalorder %v379, %v514
    %vm521 = vcmp.eq.s32.totalorder %v380, %v514
    %vm522 = vcmp.eq.s32.totalorder %v381, %v514
    %vm523 = vcmp.eq.s32.totalorder %v382, %v514
    %vm524 = vcmp.eq.s32.totalorder %v383, %v514
    %vm525 = vcmp.eq.s32.totalorder %v384, %v514
    %vm526 = vcmp.eq.s32.totalorder %v385, %v514
    %vm527 = vcmp.eq.s32.totalorder %v386, %v514
    %vm528 = vcmp.eq.s32.totalorder %v387, %v514
    %vm529 = vcmp.eq.s32.totalorder %v388, %v514
    %vm530 = vcmp.eq.s32.totalorder %v389, %v514
    %v531 = vsel %vm515, 1, 0
    %v532 = vsel %vm516, 1, 0
    %v533 = vsel %vm517, 1, 0
    %v534 = vsel %vm518, 1, 0
    %v535 = vsel %vm519, 1, 0
    %v536 = vsel %vm520, 1, 0
    %v537 = vsel %vm521, 1, 0
    %v538 = vsel %vm522, 1, 0
    %v539 = vsel %vm523, 1, 0
    %v540 = vsel %vm524, 1, 0
    %v541 = vsel %vm525, 1, 0
    %v542 = vsel %vm526, 1, 0
    %v543 = vsel %vm527, 1, 0
    %v544 = vsel %vm528, 1, 0
    %v545 = vsel %vm529, 1, 0
    %v546 = vsel %vm530, 1, 0
    %v547 = vcvt.s32.f32 %v531
    %v548 = vcvt.s32.f32 %v532
    %v549 = vcvt.s32.f32 %v533
    %v550 = vcvt.s32.f32 %v534
    %v551 = vcvt.s32.f32 %v535
    %v552 = vcvt.s32.f32 %v536
    %v553 = vcvt.s32.f32 %v537
    %v554 = vcvt.s32.f32 %v538
    %v555 = vcvt.s32.f32 %v539
    %v556 = vcvt.s32.f32 %v540
    %v557 = vcvt.s32.f32 %v541
    %v558 = vcvt.s32.f32 %v542
    %v559 = vcvt.s32.f32 %v543
    %v560 = vcvt.s32.f32 %v544
    %v561 = vcvt.s32.f32 %v545
    %v562 = vcvt.s32.f32 %v546
    %v563 = vld [vmem:[%s2] sm:$0xff]
    %v564 = vld [vmem:[%s2 + $0x8] sm:$0xff]
    %v565 = vld [vmem:[%s2 + $0x10] sm:$0xff]
    %v566 = vld [vmem:[%s2 + $0x18] sm:$0xff]
    %v567 = vld [vmem:[%s2 + $0x20] sm:$0xff]
    %v568 = vld [vmem:[%s2 + $0x28] sm:$0xff]
    %v569 = vld [vmem:[%s2 + $0x30] sm:$0xff]
    %v570 = vld [vmem:[%s2 + $0x38] sm:$0xff]
    %v571 = vld [vmem:[%s2 + $0x40] sm:$0xff]
    %v572 = vld [vmem:[%s2 + $0x48] sm:$0xff]
    %v573 = vld [vmem:[%s2 + $0x50] sm:$0xff]
    %v574 = vld [vmem:[%s2 + $0x58] sm:$0xff]
    %v575 = vld [vmem:[%s2 + $0x60] sm:$0xff]
    %v576 = vld [vmem:[%s2 + $0x68] sm:$0xff]
    %v577 = vld [vmem:[%s2 + $0x70] sm:$0xff]
    %v578 = vld [vmem:[%s2 + $0x78] sm:$0xff]
    %580 = vset.pattern.permute.xlu0 0
    %581 = vperm.xlu0 %580, %v563
    %v582 = vpop.permute.xlu0 %581
    %585 = vset.pattern.permute.xlu0 0
    %586 = vperm.xlu0 %585, %v564
    %v587 = vpop.permute.xlu0 %586
    %590 = vset.pattern.permute.xlu0 0
    %591 = vperm.xlu0 %590, %v565
    %v592 = vpop.permute.xlu0 %591
    %595 = vset.pattern.permute.xlu0 0
    %596 = vperm.xlu0 %595, %v566
    %v597 = vpop.permute.xlu0 %596
    %600 = vset.pattern.permute.xlu0 0
    %601 = vperm.xlu0 %600, %v567
    %v602 = vpop.permute.xlu0 %601
    %605 = vset.pattern.permute.xlu0 0
    %606 = vperm.xlu0 %605, %v568
    %v607 = vpop.permute.xlu0 %606
    %610 = vset.pattern.permute.xlu0 0
    %611 = vperm.xlu0 %610, %v569
    %v612 = vpop.permute.xlu0 %611
    %615 = vset.pattern.permute.xlu0 0
    %616 = vperm.xlu0 %615, %v570
    %v617 = vpop.permute.xlu0 %616
    %620 = vset.pattern.permute.xlu0 0
    %621 = vperm.xlu0 %620, %v571
    %v622 = vpop.permute.xlu0 %621
    %625 = vset.pattern.permute.xlu0 0
    %626 = vperm.xlu0 %625, %v572
    %v627 = vpop.permute.xlu0 %626
    %630 = vset.pattern.permute.xlu0 0
    %631 = vperm.xlu0 %630, %v573
    %v632 = vpop.permute.xlu0 %631
    %635 = vset.pattern.permute.xlu0 0
    %636 = vperm.xlu0 %635, %v574
    %v637 = vpop.permute.xlu0 %636
    %640 = vset.pattern.permute.xlu0 0
    %641 = vperm.xlu0 %640, %v575
    %v642 = vpop.permute.xlu0 %641
    %645 = vset.pattern.permute.xlu0 0
    %646 = vperm.xlu0 %645, %v576
    %v647 = vpop.permute.xlu0 %646
    %650 = vset.pattern.permute.xlu0 0
    %651 = vperm.xlu0 %650, %v577
    %v652 = vpop.permute.xlu0 %651
    %655 = vset.pattern.permute.xlu0 0
    %656 = vperm.xlu0 %655, %v578
    %v657 = vpop.permute.xlu0 %656
    %v659 = vmul.f32 %v547, %v582
    %v660 = vmul.f32 %v548, %v587
    %v661 = vmul.f32 %v549, %v592
    %v662 = vmul.f32 %v550, %v597
    %v663 = vmul.f32 %v551, %v602
    %v664 = vmul.f32 %v552, %v607
    %v665 = vmul.f32 %v553, %v612
    %v666 = vmul.f32 %v554, %v617
    %v667 = vmul.f32 %v555, %v622
    %v668 = vmul.f32 %v556, %v627
    %v669 = vmul.f32 %v557, %v632
    %v670 = vmul.f32 %v558, %v637
    %v671 = vmul.f32 %v559, %v642
    %v672 = vmul.f32 %v560, %v647
    %v673 = vmul.f32 %v561, %v652
    %v674 = vmul.f32 %v562, %v657
    %v675 = vsel %vm390, %v659, 0.0
    %v676 = vsel %vm390, %v660, 0.0
    %v677 = vadd.f32 %v675, %v676
    %v678 = vsel %vm390, %v661, 0.0
    %v679 = vadd.f32 %v677, %v678
    %v680 = vsel %vm390, %v662, 0.0
    %v681 = vadd.f32 %v679, %v680
    %v682 = vsel %vm390, %v663, 0.0
    %v683 = vadd.f32 %v681, %v682
    %v684 = vsel %vm390, %v664, 0.0
    %v685 = vadd.f32 %v683, %v684
    %v686 = vsel %vm390, %v665, 0.0
    %v687 = vadd.f32 %v685, %v686
    %v688 = vsel %vm390, %v666, 0.0
    %v689 = vadd.f32 %v687, %v688
    %v690 = vsel %vm390, %v667, 0.0
    %v691 = vadd.f32 %v689, %v690
    %v692 = vsel %vm390, %v668, 0.0
    %v693 = vadd.f32 %v691, %v692
    %v694 = vsel %vm390, %v669, 0.0
    %v695 = vadd.f32 %v693, %v694
    %v696 = vsel %vm390, %v670, 0.0
    %v697 = vadd.f32 %v695, %v696
    %v698 = vsel %vm390, %v671, 0.0
    %v699 = vadd.f32 %v697, %v698
    %v700 = vsel %vm390, %v672, 0.0
    %v701 = vadd.f32 %v699, %v700
    %v702 = vsel %vm390, %v673, 0.0
    %v703 = vadd.f32 %v701, %v702
    %v704 = vsel %vm390, %v674, 0.0
    %v705 = vadd.f32 %v703, %v704
    %v706 = vrot.slane %v705, 4
    %v707 = vadd.f32 %v705, %v706
    %v708 = vrot.slane %v707, 2
    %v709 = vadd.f32 %v707, %v708
    %v710 = vrot.slane %v709, 1
    %v711 = vadd.f32 %v709, %v710
    %vm712 = vcmask 8192
    %713 = vst.msk [vmem:[#allocation2] sm:$0x1] %vm712, %v711
    %v714 = vsel %vm390, %v295, inf
    %v715 = vsel %vm390, %v300, inf
    %v716 = vsel %vm390, %v305, inf
    %v717 = vsel %vm390, %v310, inf
    %v718 = vsel %vm390, %v315, inf
    %v719 = vmin.f32 %v714, %v718
    %v720 = vsel %vm390, %v320, inf
    %v721 = vmin.f32 %v715, %v720
    %v722 = vsel %vm390, %v325, inf
    %v723 = vmin.f32 %v716, %v722
    %v724 = vsel %vm390, %v330, inf
    %v725 = vmin.f32 %v717, %v724
    %v726 = vsel %vm390, %v335, inf
    %v727 = vmin.f32 %v719, %v726
    %v728 = vsel %vm390, %v340, inf
    %v729 = vmin.f32 %v721, %v728
    %v730 = vsel %vm390, %v345, inf
    %v731 = vmin.f32 %v723, %v730
    %v732 = vsel %vm390, %v350, inf
    %v733 = vmin.f32 %v725, %v732
    %v734 = vsel %vm390, %v355, inf
    %v735 = vmin.f32 %v727, %v734
    %v736 = vsel %vm390, %v360, inf
    %v737 = vmin.f32 %v729, %v736
    %v738 = vsel %vm390, %v365, inf
    %v739 = vmin.f32 %v731, %v738
    %v740 = vsel %vm390, %v370, inf
    %v741 = vmin.f32 %v733, %v740
    %v742 = vmin.f32 %v735, %v737
    %v743 = vmin.f32 %v739, %v741
    %v744 = vmin.f32 %v742, %v743
    %v745 = vrot.slane %v744, 4
    %v746 = vmin.f32 %v744, %v745
    %v747 = vrot.slane %v746, 2
    %v748 = vmin.f32 %v746, %v747
    %v749 = vrot.slane %v748, 1
    %v750 = vmin.f32 %v748, %v749
    %vm751 = vcmp.eq.f32.partialorder %v295, %v750
    %vm752 = vcmp.eq.f32.partialorder %v300, %v750
    %vm753 = vcmp.eq.f32.partialorder %v305, %v750
    %vm754 = vcmp.eq.f32.partialorder %v310, %v750
    %vm755 = vcmp.eq.f32.partialorder %v315, %v750
    %vm756 = vcmp.eq.f32.partialorder %v320, %v750
    %vm757 = vcmp.eq.f32.partialorder %v325, %v750
    %vm758 = vcmp.eq.f32.partialorder %v330, %v750
    %vm759 = vcmp.eq.f32.partialorder %v335, %v750
    %vm760 = vcmp.eq.f32.partialorder %v340, %v750
    %vm761 = vcmp.eq.f32.partialorder %v345, %v750
    %vm762 = vcmp.eq.f32.partialorder %v350, %v750
    %vm763 = vcmp.eq.f32.partialorder %v355, %v750
    %vm764 = vcmp.eq.f32.partialorder %v360, %v750
    %vm765 = vcmp.eq.f32.partialorder %v365, %v750
    %vm766 = vcmp.eq.f32.partialorder %v370, %v750
    %v767 = vsel %vm751, %v374, 128
    %v768 = vsel %vm752, %v375, 128
    %v769 = vsel %vm753, %v376, 128
    %v770 = vsel %vm754, %v377, 128
    %v771 = vsel %vm755, %v378, 128
    %v772 = vsel %vm756, %v379, 128
    %v773 = vsel %vm757, %v380, 128
    %v774 = vsel %vm758, %v381, 128
    %v775 = vsel %vm759, %v382, 128
    %v776 = vsel %vm760, %v383, 128
    %v777 = vsel %vm761, %v384, 128
    %v778 = vsel %vm762, %v385, 128
    %v779 = vsel %vm763, %v386, 128
    %v780 = vsel %vm764, %v387, 128
    %v781 = vsel %vm765, %v388, 128
    %v782 = vsel %vm766, %v389, 128
    %v783 = vsel %vm390, %v767, 2147483647
    %v784 = vsel %vm390, %v768, 2147483647
    %v785 = vsel %vm390, %v769, 2147483647
    %v786 = vsel %vm390, %v770, 2147483647
    %v787 = vsel %vm390, %v771, 2147483647
    %vm788 = vcmp.lt.s32.totalorder %v783, %v787
    %v789 = vsel %vm788, %v783, %v787
    %v790 = vsel %vm390, %v772, 2147483647
    %vm791 = vcmp.lt.s32.totalorder %v784, %v790
    %v792 = vsel %vm791, %v784, %v790
    %v793 = vsel %vm390, %v773, 2147483647
    %vm794 = vcmp.lt.s32.totalorder %v785, %v793
    %v795 = vsel %vm794, %v785, %v793
    %v796 = vsel %vm390, %v774, 2147483647
    %vm797 = vcmp.lt.s32.totalorder %v786, %v796
    %v798 = vsel %vm797, %v786, %v796
    %v799 = vsel %vm390, %v775, 2147483647
    %vm800 = vcmp.lt.s32.totalorder %v789, %v799
    %v801 = vsel %vm800, %v789, %v799
    %v802 = vsel %vm390, %v776, 2147483647
    %vm803 = vcmp.lt.s32.totalorder %v792, %v802
    %v804 = vsel %vm803, %v792, %v802
    %v805 = vsel %vm390, %v777, 2147483647
    %vm806 = vcmp.lt.s32.totalorder %v795, %v805
    %v807 = vsel %vm806, %v795, %v805
    %v808 = vsel %vm390, %v778, 2147483647
    %vm809 = vcmp.lt.s32.totalorder %v798, %v808
    %v810 = vsel %vm809, %v798, %v808
    %v811 = vsel %vm390, %v779, 2147483647
    %vm812 = vcmp.lt.s32.totalorder %v801, %v811
    %v813 = vsel %vm812, %v801, %v811
    %v814 = vsel %vm390, %v780, 2147483647
    %vm815 = vcmp.lt.s32.totalorder %v804, %v814
    %v816 = vsel %vm815, %v804, %v814
    %v817 = vsel %vm390, %v781, 2147483647
    %vm818 = vcmp.lt.s32.totalorder %v807, %v817
    %v819 = vsel %vm818, %v807, %v817
    %v820 = vsel %vm390, %v782, 2147483647
    %vm821 = vcmp.lt.s32.totalorder %v810, %v820
    %v822 = vsel %vm821, %v810, %v820
    %vm823 = vcmp.lt.s32.totalorder %v813, %v816
    %v824 = vsel %vm823, %v813, %v816
    %vm825 = vcmp.lt.s32.totalorder %v819, %v822
    %v826 = vsel %vm825, %v819, %v822
    %vm827 = vcmp.lt.s32.totalorder %v824, %v826
    %v828 = vsel %vm827, %v824, %v826
    %v829 = vrot.slane %v828, 4
    %vm830 = vcmp.lt.s32.totalorder %v828, %v829
    %v831 = vsel %vm830, %v828, %v829
    %v832 = vrot.slane %v831, 2
    %vm833 = vcmp.lt.s32.totalorder %v831, %v832
    %v834 = vsel %vm833, %v831, %v832
    %v835 = vrot.slane %v834, 1
    %vm836 = vcmp.lt.s32.totalorder %v834, %v835
    %v837 = vsel %vm836, %v834, %v835
    %vm838 = vcmp.eq.s32.totalorder %v374, %v837
    %vm839 = vcmp.eq.s32.totalorder %v375, %v837
    %vm840 = vcmp.eq.s32.totalorder %v376, %v837
    %vm841 = vcmp.eq.s32.totalorder %v377, %v837
    %vm842 = vcmp.eq.s32.totalorder %v378, %v837
    %vm843 = vcmp.eq.s32.totalorder %v379, %v837
    %vm844 = vcmp.eq.s32.totalorder %v380, %v837
    %vm845 = vcmp.eq.s32.totalorder %v381, %v837
    %vm846 = vcmp.eq.s32.totalorder %v382, %v837
    %vm847 = vcmp.eq.s32.totalorder %v383, %v837
    %vm848 = vcmp.eq.s32.totalorder %v384, %v837
    %vm849 = vcmp.eq.s32.totalorder %v385, %v837
    %vm850 = vcmp.eq.s32.totalorder %v386, %v837
    %vm851 = vcmp.eq.s32.totalorder %v387, %v837
    %vm852 = vcmp.eq.s32.totalorder %v388, %v837
    %vm853 = vcmp.eq.s32.totalorder %v389, %v837
    %v854 = vsel %vm838, 1, 0
    %v855 = vsel %vm839, 1, 0
    %v856 = vsel %vm840, 1, 0
    %v857 = vsel %vm841, 1, 0
    %v858 = vsel %vm842, 1, 0
    %v859 = vsel %vm843, 1, 0
    %v860 = vsel %vm844, 1, 0
    %v861 = vsel %vm845, 1, 0
    %v862 = vsel %vm846, 1, 0
    %v863 = vsel %vm847, 1, 0
    %v864 = vsel %vm848, 1, 0
    %v865 = vsel %vm849, 1, 0
    %v866 = vsel %vm850, 1, 0
    %v867 = vsel %vm851, 1, 0
    %v868 = vsel %vm852, 1, 0
    %v869 = vsel %vm853, 1, 0
    %v870 = vcvt.s32.f32 %v854
    %v871 = vcvt.s32.f32 %v855
    %v872 = vcvt.s32.f32 %v856
    %v873 = vcvt.s32.f32 %v857
    %v874 = vcvt.s32.f32 %v858
    %v875 = vcvt.s32.f32 %v859
    %v876 = vcvt.s32.f32 %v860
    %v877 = vcvt.s32.f32 %v861
    %v878 = vcvt.s32.f32 %v862
    %v879 = vcvt.s32.f32 %v863
    %v880 = vcvt.s32.f32 %v864
    %v881 = vcvt.s32.f32 %v865
    %v882 = vcvt.s32.f32 %v866
    %v883 = vcvt.s32.f32 %v867
    %v884 = vcvt.s32.f32 %v868
    %v885 = vcvt.s32.f32 %v869
    %v886 = vld [vmem:[%s2 + $0x80] sm:$0xff]
    %v887 = vld [vmem:[%s2 + $0x88] sm:$0xff]
    %v888 = vld [vmem:[%s2 + $0x90] sm:$0xff]
    %v889 = vld [vmem:[%s2 + $0x98] sm:$0xff]
    %v890 = vld [vmem:[%s2 + $0xa0] sm:$0xff]
    %v891 = vld [vmem:[%s2 + $0xa8] sm:$0xff]
    %v892 = vld [vmem:[%s2 + $0xb0] sm:$0xff]
    %v893 = vld [vmem:[%s2 + $0xb8] sm:$0xff]
    %v894 = vld [vmem:[%s2 + $0xc0] sm:$0xff]
    %v895 = vld [vmem:[%s2 + $0xc8] sm:$0xff]
    %v896 = vld [vmem:[%s2 + $0xd0] sm:$0xff]
    %v897 = vld [vmem:[%s2 + $0xd8] sm:$0xff]
    %v898 = vld [vmem:[%s2 + $0xe0] sm:$0xff]
    %v899 = vld [vmem:[%s2 + $0xe8] sm:$0xff]
    %v900 = vld [vmem:[%s2 + $0xf0] sm:$0xff]
    %v901 = vld [vmem:[%s2 + $0xf8] sm:$0xff]
    %903 = vset.pattern.permute.xlu0 0
    %904 = vperm.xlu0 %903, %v886
    %v905 = vpop.permute.xlu0 %904
    %908 = vset.pattern.permute.xlu0 0
    %909 = vperm.xlu0 %908, %v887
    %v910 = vpop.permute.xlu0 %909
    %913 = vset.pattern.permute.xlu0 0
    %914 = vperm.xlu0 %913, %v888
    %v915 = vpop.permute.xlu0 %914
    %918 = vset.pattern.permute.xlu0 0
    %919 = vperm.xlu0 %918, %v889
    %v920 = vpop.permute.xlu0 %919
    %923 = vset.pattern.permute.xlu0 0
    %924 = vperm.xlu0 %923, %v890
    %v925 = vpop.permute.xlu0 %924
    %928 = vset.pattern.permute.xlu0 0
    %929 = vperm.xlu0 %928, %v891
    %v930 = vpop.permute.xlu0 %929
    %933 = vset.pattern.permute.xlu0 0
    %934 = vperm.xlu0 %933, %v892
    %v935 = vpop.permute.xlu0 %934
    %938 = vset.pattern.permute.xlu0 0
    %939 = vperm.xlu0 %938, %v893
    %v940 = vpop.permute.xlu0 %939
    %943 = vset.pattern.permute.xlu0 0
    %944 = vperm.xlu0 %943, %v894
    %v945 = vpop.permute.xlu0 %944
    %948 = vset.pattern.permute.xlu0 0
    %949 = vperm.xlu0 %948, %v895
    %v950 = vpop.permute.xlu0 %949
    %953 = vset.pattern.permute.xlu0 0
    %954 = vperm.xlu0 %953, %v896
    %v955 = vpop.permute.xlu0 %954
    %958 = vset.pattern.permute.xlu0 0
    %959 = vperm.xlu0 %958, %v897
    %v960 = vpop.permute.xlu0 %959
    %963 = vset.pattern.permute.xlu0 0
    %964 = vperm.xlu0 %963, %v898
    %v965 = vpop.permute.xlu0 %964
    %968 = vset.pattern.permute.xlu0 0
    %969 = vperm.xlu0 %968, %v899
    %v970 = vpop.permute.xlu0 %969
    %973 = vset.pattern.permute.xlu0 0
    %974 = vperm.xlu0 %973, %v900
    %v975 = vpop.permute.xlu0 %974
    %978 = vset.pattern.permute.xlu0 0
    %979 = vperm.xlu0 %978, %v901
    %v980 = vpop.permute.xlu0 %979
    %v982 = vmul.f32 %v870, %v905
    %v983 = vmul.f32 %v871, %v910
    %v984 = vmul.f32 %v872, %v915
    %v985 = vmul.f32 %v873, %v920
    %v986 = vmul.f32 %v874, %v925
    %v987 = vmul.f32 %v875, %v930
    %v988 = vmul.f32 %v876, %v935
    %v989 = vmul.f32 %v877, %v940
    %v990 = vmul.f32 %v878, %v945
    %v991 = vmul.f32 %v879, %v950
    %v992 = vmul.f32 %v880, %v955
    %v993 = vmul.f32 %v881, %v960
    %v994 = vmul.f32 %v882, %v965
    %v995 = vmul.f32 %v883, %v970
    %v996 = vmul.f32 %v884, %v975
    %v997 = vmul.f32 %v885, %v980
    %v998 = vsel %vm390, %v982, 0.0
    %v999 = vsel %vm390, %v983, 0.0
    %v1000 = vadd.f32 %v998, %v999
    %v1001 = vsel %vm390, %v984, 0.0
    %v1002 = vadd.f32 %v1000, %v1001
    %v1003 = vsel %vm390, %v985, 0.0
    %v1004 = vadd.f32 %v1002, %v1003
    %v1005 = vsel %vm390, %v986, 0.0
    %v1006 = vadd.f32 %v1004, %v1005
    %v1007 = vsel %vm390, %v987, 0.0
    %v1008 = vadd.f32 %v1006, %v1007
    %v1009 = vsel %vm390, %v988, 0.0
    %v1010 = vadd.f32 %v1008, %v1009
    %v1011 = vsel %vm390, %v989, 0.0
    %v1012 = vadd.f32 %v1010, %v1011
    %v1013 = vsel %vm390, %v990, 0.0
    %v1014 = vadd.f32 %v1012, %v1013
    %v1015 = vsel %vm390, %v991, 0.0
    %v1016 = vadd.f32 %v1014, %v1015
    %v1017 = vsel %vm390, %v992, 0.0
    %v1018 = vadd.f32 %v1016, %v1017
    %v1019 = vsel %vm390, %v993, 0.0
    %v1020 = vadd.f32 %v1018, %v1019
    %v1021 = vsel %vm390, %v994, 0.0
    %v1022 = vadd.f32 %v1020, %v1021
    %v1023 = vsel %vm390, %v995, 0.0
    %v1024 = vadd.f32 %v1022, %v1023
    %v1025 = vsel %vm390, %v996, 0.0
    %v1026 = vadd.f32 %v1024, %v1025
    %v1027 = vsel %vm390, %v997, 0.0
    %v1028 = vadd.f32 %v1026, %v1027
    %v1029 = vrot.slane %v1028, 4
    %v1030 = vadd.f32 %v1028, %v1029
    %v1031 = vrot.slane %v1030, 2
    %v1032 = vadd.f32 %v1030, %v1031
    %v1033 = vrot.slane %v1032, 1
    %v1034 = vadd.f32 %v1032, %v1033
    %1035 = vst.msk [vmem:[#allocation2 + $0x1] sm:$0x1] %vm712, %v1034
    // Predicated region
    $region14: #{tpu_custom_call.1} parent=1 // pred_check
      _
    $region15: #{tpu_custom_call.1} parent=1 // pred_check_branch
      %1037 = sbr.rel (0) target = $region17
    $region16: #{tpu_custom_call.1} parent=1 // pred_region
      %s1039 = ssub.s32 32, 32
      %1040 = vsyncadd [#allocation3], %s1039
      %s1042 = sshll.u32 [#allocation2], 4
      %s1043 = int_to_ptr.vmem [resolvable:$true] %s1042
      %1045 = dma.vmem_to_hbm [thread:$0]  %s1043, 32, %s3, [#allocation3]
    $region17: #{tpu_custom_call.1} parent=1 // pred_fallthru
      _
    // Predicated region
    $region18: #{tpu_custom_call.1} parent=1 // pred_check
      _
    $region19: #{tpu_custom_call.1} parent=1 // pred_check_branch
      %1047 = sbr.rel (0) target = $region21
    $region20: #{tpu_custom_call.1} parent=1 // pred_region
      %1048 = dma.done [#allocation3], 32
    $region21: #{tpu_custom_call.1} parent=1 // pred_fallthru
      _
    %1049 = vsyncpa [#allocation3], 1

</llo_original>
